<compile_context>
chip_gen: v6e
topology: v6e:2x2x1
jax: 0.10.0
libtpu: 0.0.40
codegen_flags: <defaults>
</compile_context>

<pallas_src>
import jax
import jax.numpy as jnp
from jax.experimental import pallas as pl
from jax.experimental.pallas import tpu as pltpu


def _edge_processor_kernel(
    src_ref,            # [TE, Dn]  bf16
    dst_ref,            # [TE, Dn]  bf16
    ea_ref,             # [TE, De]  bf16
    w1s_ref, w1d_ref, w1e_ref, b1_ref,   # bf16 [Dn,Hp], [Dn,Hp], [De,Hp]; f32 [1,Hp]
    w2_ref, b2_ref,     # bf16 [Hp, Hp], f32 [1, Hp]
    w3_ref, b3_ref,     # bf16 [Hp, De], f32 [1, De]
    gamma_ref, beta_ref,  # f32 [1, De], [1, De]
    o_ref,              # [TE, De] f32
):
    src = src_ref[...]
    dst = dst_ref[...]
    ea = ea_ref[...]

    # Layer 1: cat([src, dest, edge_attr]) @ w1 == src@w1s + dest@w1d + ea@w1e
    h = (
        jnp.dot(src, w1s_ref[...], preferred_element_type=jnp.float32)
        + jnp.dot(dst, w1d_ref[...], preferred_element_type=jnp.float32)
        + jnp.dot(ea, w1e_ref[...], preferred_element_type=jnp.float32)
        + b1_ref[...]
    )
    h = jnp.maximum(h, 0.0)
    # Layer 2 (hidden): bf16 operands, f32 accumulation.
    h = jnp.dot(h.astype(jnp.bfloat16), w2_ref[...],
                preferred_element_type=jnp.float32) + b2_ref[...]
    h = jnp.maximum(h, 0.0)
    # Layer 3 (output, width De).
    h = jnp.dot(h.astype(jnp.bfloat16), w3_ref[...],
                preferred_element_type=jnp.float32) + b3_ref[...]

    # LayerNorm over the De feature lanes (feature axis is unpadded -> no mask).
    mean = jnp.mean(h, axis=-1, keepdims=True)
    diff = h - mean
    var = jnp.mean(diff * diff, axis=-1, keepdims=True)
    hn = diff * jax.lax.rsqrt(var + 1e-5)
    hn = hn * gamma_ref[...] + beta_ref[...]

    # Residual: out = LayerNorm(MLP(...)) + edge_attr
    o_ref[...] = (hn + ea.astype(jnp.float32)).astype(o_ref.dtype)


def _round_up(n: int, m: int) -> int:
    return ((n + m - 1) // m) * m


def edge_processor(src, dest, edge_attr, params, *, tile_e: int = 1024):
    """src/dest: [E, Dn] f32, edge_attr: [E, De] f32 -> updated edge_attr [E, De]."""
    E, Dn = src.shape
    De = edge_attr.shape[1]
    w1, b1, w2, b2, w3, b3, gamma, beta = params
    H = w1.shape[1]
    H_p = _round_up(H, 128)   # hidden dim is weight-only -> cheap to pad lane-dense

    # bf16 streams for the big per-edge arrays (accumulation stays f32 in-kernel).
    src_b = src.astype(jnp.bfloat16)
    dst_b = dest.astype(jnp.bfloat16)
    ea_b = edge_attr.astype(jnp.bfloat16)

    def pad_w(w, rows, cols):
        w = jnp.pad(w, ((0, rows - w.shape[0]), (0, cols - w.shape[1])))
        return w.astype(jnp.bfloat16)

    # Split w1 along K into src / dest / edge blocks (removes the in-kernel
    # concat); zero-pad only the hidden dimension.
    w1s = pad_w(w1[:Dn], Dn, H_p)
    w1d = pad_w(w1[Dn:2 * Dn], Dn, H_p)
    w1e = pad_w(w1[2 * Dn:], De, H_p)
    b1_p = jnp.pad(b1, (0, H_p - H)).reshape(1, -1).astype(jnp.float32)
    w2_p = pad_w(w2, H_p, H_p)
    b2_p = jnp.pad(b2, (0, H_p - H)).reshape(1, -1).astype(jnp.float32)
    w3_p = pad_w(w3, H_p, De)
    b3_p = b3.reshape(1, -1).astype(jnp.float32)
    gamma_p = gamma.reshape(1, -1).astype(jnp.float32)
    beta_p = beta.reshape(1, -1).astype(jnp.float32)

    # Row tile: big (for HBM roofline) but clamped so the grid has >= 2 steps
    # (keeps both TensorCores busy on v7x). Multiple of 8 (sublane).
    tile_rows = min(tile_e, _round_up(max(pl.cdiv(E, 2), 8), 8))
    grid = (pl.cdiv(E, tile_rows),)   # ragged last block handled by Pallas

    row_n = pl.BlockSpec((tile_rows, Dn), lambda i: (i, 0))
    row_e = pl.BlockSpec((tile_rows, De), lambda i: (i, 0))

    def const_spec(shape):
        # Constant block index -> Pallas keeps it VMEM-resident, no re-DMA.
        return pl.BlockSpec(shape, lambda i: (0, 0))

    out = pl.pallas_call(
        _edge_processor_kernel,
        out_shape=jax.ShapeDtypeStruct((E, De), edge_attr.dtype),
        grid_spec=pltpu.PrefetchScalarGridSpec(
            num_scalar_prefetch=0,
            grid=grid,
            in_specs=[
                row_n,                         # src tile
                row_n,                         # dest tile
                row_e,                         # edge_attr tile
                const_spec((Dn, H_p)),         # w1_src
                const_spec((Dn, H_p)),         # w1_dst
                const_spec((De, H_p)),         # w1_edge
                const_spec((1, H_p)),          # b1
                const_spec((H_p, H_p)),        # w2
                const_spec((1, H_p)),          # b2
                const_spec((H_p, De)),         # w3
                const_spec((1, De)),           # b3
                const_spec((1, De)),           # gamma
                const_spec((1, De)),           # beta
            ],
            out_specs=row_e,
        ),
        compiler_params=pltpu.CompilerParams(
            dimension_semantics=("parallel",),   # E tiles are independent
            vmem_limit_bytes=32 << 20,           # a few MiB needed; safe on v7x
        ),
    )(src_b, dst_b, ea_b, w1s, w1d, w1e, b1_p, w2_p, b2_p, w3_p, b3_p,
      gamma_p, beta_p)

    return out


def _reference(src, dest, edge_attr, params):
    """Pure-JAX f32 reference mirroring the PyTorch EdgeProcessor."""
    w1, b1, w2, b2, w3, b3, gamma, beta = params
    h = jnp.concatenate([src, dest, edge_attr], axis=-1)
    h = jnp.maximum(h @ w1 + b1, 0.0)
    h = jnp.maximum(h @ w2 + b2, 0.0)
    h = h @ w3 + b3
    mean = jnp.mean(h, axis=-1, keepdims=True)
    var = jnp.mean((h - mean) ** 2, axis=-1, keepdims=True)
    hn = (h - mean) / jnp.sqrt(var + 1e-5) * gamma + beta
    return hn + edge_attr


def _init_params(key, in_dim_node, in_dim_edge, hidden_dim):
    """PyTorch nn.Linear-style init: U(-1/sqrt(fan_in), 1/sqrt(fan_in))."""
    def linear(k, fan_in, fan_out):
        k1, k2 = jax.random.split(k)
        bound = 1.0 / jnp.sqrt(fan_in)
        w = jax.random.uniform(k1, (fan_in, fan_out), jnp.float32, -bound, bound)
        b = jax.random.uniform(k2, (fan_out,), jnp.float32, -bound, bound)
        return w, b

    k1, k2, k3 = jax.random.split(key, 3)
    in_dim = 2 * in_dim_node + in_dim_edge
    w1, b1 = linear(k1, in_dim, hidden_dim)
    w2, b2 = linear(k2, hidden_dim, hidden_dim)
    w3, b3 = linear(k3, hidden_dim, in_dim_edge)   # MLP out_dim = in_dim_edge
    gamma = jnp.ones((in_dim_edge,), jnp.float32)
    beta = jnp.zeros((in_dim_edge,), jnp.float32)
    return (w1, b1, w2, b2, w3, b3, gamma, beta)


if __name__ == "__main__":
    # Small shapes consistent with the module (hidden_layers=2, LayerNorm).
    N, E = 16, 64
    in_dim_node, in_dim_edge, hidden_dim = 32, 32, 32

    key = jax.random.PRNGKey(0)
    kx, ke, ki, kp = jax.random.split(key, 4)

    x = jax.random.normal(kx, (N, in_dim_node), jnp.float32)
    edge_attr = jax.random.normal(ke, (E, in_dim_edge), jnp.float32)
    edge_index = jax.random.randint(ki, (2, E), 0, N, dtype=jnp.int32)

    # EdgeProcessor.forward takes src / dest node features already gathered
    # per edge (as done by the surrounding GraphNetBlock).
    src = x[edge_index[0]]
    dest = x[edge_index[1]]

    params = _init_params(kp, in_dim_node, in_dim_edge, hidden_dim)

    out = edge_processor(src, dest, edge_attr, params)
    out = jax.block_until_ready(out)

    ref = _reference(src, dest, edge_attr, params)
    assert out.shape == (E, in_dim_edge)
    # bf16-streamed operands vs f32 reference -> bf16-level tolerance.
    assert jnp.allclose(out, ref, atol=1e-1, rtol=1e-1), "mismatch vs reference"

    print("KERNEL_OK")
</pallas_src>

<mosaic_0001>
module attributes {stable_mosaic.version = 11 : i64} {
  func.func @_edge_processor_kernel(%arg0: i32, %arg1: memref<32x32xbf16, #tpu.memory_space<vmem>>, %arg2: memref<32x32xbf16, #tpu.memory_space<vmem>>, %arg3: memref<32x32xbf16, #tpu.memory_space<vmem>>, %arg4: memref<32x128xbf16, #tpu.memory_space<vmem>>, %arg5: memref<32x128xbf16, #tpu.memory_space<vmem>>, %arg6: memref<32x128xbf16, #tpu.memory_space<vmem>>, %arg7: memref<1x128xf32, #tpu.memory_space<vmem>>, %arg8: memref<128x128xbf16, #tpu.memory_space<vmem>>, %arg9: memref<1x128xf32, #tpu.memory_space<vmem>>, %arg10: memref<128x32xbf16, #tpu.memory_space<vmem>>, %arg11: memref<1x32xf32, #tpu.memory_space<vmem>>, %arg12: memref<1x32xf32, #tpu.memory_space<vmem>>, %arg13: memref<1x32xf32, #tpu.memory_space<vmem>>, %arg14: memref<32x32xf32, #tpu.memory_space<vmem>>) attributes {dimension_semantics = [#tpu.dimension_semantics<parallel>], iteration_bounds = array<i64: 2>, scalar_prefetch = 0 : i64, scratch_operands = 0 : i64, tpu.core_type = #tpu.core_type<tc>, window_params = [{transform_indices = @transform_0, window_bounds = array<i64: 32, 32>}, {transform_indices = @transform_1, window_bounds = array<i64: 32, 32>}, {transform_indices = @transform_2, window_bounds = array<i64: 32, 32>}, {pipeline_mode = #tpu.pipeline_mode<synchronous>, transform_indices = @transform_3, window_bounds = array<i64: 32, 128>}, {pipeline_mode = #tpu.pipeline_mode<synchronous>, transform_indices = @transform_4, window_bounds = array<i64: 32, 128>}, {pipeline_mode = #tpu.pipeline_mode<synchronous>, transform_indices = @transform_5, window_bounds = array<i64: 32, 128>}, {pipeline_mode = #tpu.pipeline_mode<synchronous>, transform_indices = @transform_6, window_bounds = array<i64: 1, 128>}, {pipeline_mode = #tpu.pipeline_mode<synchronous>, transform_indices = @transform_7, window_bounds = array<i64: 128, 128>}, {pipeline_mode = #tpu.pipeline_mode<synchronous>, transform_indices = @transform_8, window_bounds = array<i64: 1, 128>}, {pipeline_mode = #tpu.pipeline_mode<synchronous>, transform_indices = @transform_9, window_bounds = array<i64: 128, 32>}, {pipeline_mode = #tpu.pipeline_mode<synchronous>, transform_indices = @transform_10, window_bounds = array<i64: 1, 32>}, {pipeline_mode = #tpu.pipeline_mode<synchronous>, transform_indices = @transform_11, window_bounds = array<i64: 1, 32>}, {pipeline_mode = #tpu.pipeline_mode<synchronous>, transform_indices = @transform_12, window_bounds = array<i64: 1, 32>}, {transform_indices = @transform_13, window_bounds = array<i64: 32, 32>}]} {
    %c0 = arith.constant 0 : index
    %c0_0 = arith.constant 0 : index
    %0 = vector.load %arg1[%c0, %c0_0] : memref<32x32xbf16, #tpu.memory_space<vmem>>, vector<32x32xbf16>
    %c0_1 = arith.constant 0 : index
    %c0_2 = arith.constant 0 : index
    %1 = vector.load %arg2[%c0_1, %c0_2] : memref<32x32xbf16, #tpu.memory_space<vmem>>, vector<32x32xbf16>
    %c0_3 = arith.constant 0 : index
    %c0_4 = arith.constant 0 : index
    %2 = vector.load %arg3[%c0_3, %c0_4] : memref<32x32xbf16, #tpu.memory_space<vmem>>, vector<32x32xbf16>
    %c0_5 = arith.constant 0 : index
    %c0_6 = arith.constant 0 : index
    %3 = vector.load %arg4[%c0_5, %c0_6] : memref<32x128xbf16, #tpu.memory_space<vmem>>, vector<32x128xbf16>
    %cst = arith.constant dense<0.000000e+00> : vector<32x128xf32>
    %4 = tpu.matmul %0, %3, %cst {dimension_numbers = #tpu.dot_dimension_numbers<[1], [0], [0], [1], [0, 0, 1, 1], [], []>} : vector<32x32xbf16>, vector<32x128xbf16>, vector<32x128xf32> -> vector<32x128xf32>
    %c0_7 = arith.constant 0 : index
    %c0_8 = arith.constant 0 : index
    %5 = vector.load %arg5[%c0_7, %c0_8] : memref<32x128xbf16, #tpu.memory_space<vmem>>, vector<32x128xbf16>
    %cst_9 = arith.constant dense<0.000000e+00> : vector<32x128xf32>
    %6 = tpu.matmul %1, %5, %cst_9 {dimension_numbers = #tpu.dot_dimension_numbers<[1], [0], [0], [1], [0, 0, 1, 1], [], []>} : vector<32x32xbf16>, vector<32x128xbf16>, vector<32x128xf32> -> vector<32x128xf32>
    %7 = arith.addf %4, %6 : vector<32x128xf32>
    %c0_10 = arith.constant 0 : index
    %c0_11 = arith.constant 0 : index
    %8 = vector.load %arg6[%c0_10, %c0_11] : memref<32x128xbf16, #tpu.memory_space<vmem>>, vector<32x128xbf16>
    %cst_12 = arith.constant dense<0.000000e+00> : vector<32x128xf32>
    %9 = tpu.matmul %2, %8, %cst_12 {dimension_numbers = #tpu.dot_dimension_numbers<[1], [0], [0], [1], [0, 0, 1, 1], [], []>} : vector<32x32xbf16>, vector<32x128xbf16>, vector<32x128xf32> -> vector<32x128xf32>
    %10 = arith.addf %7, %9 : vector<32x128xf32>
    %c0_13 = arith.constant 0 : index
    %c0_14 = arith.constant 0 : index
    %11 = vector.load %arg7[%c0_13, %c0_14] : memref<1x128xf32, #tpu.memory_space<vmem>>, vector<1x128xf32>
    %12 = vector.broadcast %11 : vector<1x128xf32> to vector<32x128xf32>
    %13 = arith.addf %10, %12 : vector<32x128xf32>
    %cst_15 = arith.constant 0.000000e+00 : f32
    %14 = vector.broadcast %cst_15 : f32 to vector<32x128xf32>
    %15 = arith.maximumf %13, %14 : vector<32x128xf32>
    %16 = arith.truncf %15 : vector<32x128xf32> to vector<32x128xbf16>
    %c0_16 = arith.constant 0 : index
    %c0_17 = arith.constant 0 : index
    %17 = vector.load %arg8[%c0_16, %c0_17] : memref<128x128xbf16, #tpu.memory_space<vmem>>, vector<128x128xbf16>
    %cst_18 = arith.constant dense<0.000000e+00> : vector<32x128xf32>
    %18 = tpu.matmul %16, %17, %cst_18 {dimension_numbers = #tpu.dot_dimension_numbers<[1], [0], [0], [1], [0, 0, 1, 1], [], []>} : vector<32x128xbf16>, vector<128x128xbf16>, vector<32x128xf32> -> vector<32x128xf32>
    %c0_19 = arith.constant 0 : index
    %c0_20 = arith.constant 0 : index
    %19 = vector.load %arg9[%c0_19, %c0_20] : memref<1x128xf32, #tpu.memory_space<vmem>>, vector<1x128xf32>
    %20 = vector.broadcast %19 : vector<1x128xf32> to vector<32x128xf32>
    %21 = arith.addf %18, %20 : vector<32x128xf32>
    %cst_21 = arith.constant 0.000000e+00 : f32
    %22 = vector.broadcast %cst_21 : f32 to vector<32x128xf32>
    %23 = arith.maximumf %21, %22 : vector<32x128xf32>
    %24 = arith.truncf %23 : vector<32x128xf32> to vector<32x128xbf16>
    %c0_22 = arith.constant 0 : index
    %c0_23 = arith.constant 0 : index
    %25 = vector.load %arg10[%c0_22, %c0_23] : memref<128x32xbf16, #tpu.memory_space<vmem>>, vector<128x32xbf16>
    %cst_24 = arith.constant dense<0.000000e+00> : vector<32x32xf32>
    %26 = tpu.matmul %24, %25, %cst_24 {dimension_numbers = #tpu.dot_dimension_numbers<[1], [0], [0], [1], [0, 0, 1, 1], [], []>} : vector<32x128xbf16>, vector<128x32xbf16>, vector<32x32xf32> -> vector<32x32xf32>
    %c0_25 = arith.constant 0 : index
    %c0_26 = arith.constant 0 : index
    %27 = vector.load %arg11[%c0_25, %c0_26] : memref<1x32xf32, #tpu.memory_space<vmem>>, vector<1x32xf32>
    %28 = vector.broadcast %27 : vector<1x32xf32> to vector<32x32xf32>
    %29 = arith.addf %26, %28 : vector<32x32xf32>
    %cst_27 = arith.constant dense<0.000000e+00> : vector<32xf32>
    %30 = vector.multi_reduction <add>, %29, %cst_27 [1] : vector<32x32xf32> to vector<32xf32>
    %31 = vector.shape_cast %30 : vector<32xf32> to vector<32x1xf32>
    %cst_28 = arith.constant 3.200000e+01 : f32
    %32 = vector.broadcast %cst_28 : f32 to vector<32x1xf32>
    %33 = arith.divf %31, %32 : vector<32x1xf32>
    %34 = vector.broadcast %33 : vector<32x1xf32> to vector<32x32xf32>
    %35 = arith.subf %29, %34 : vector<32x32xf32>
    %36 = arith.mulf %35, %35 : vector<32x32xf32>
    %cst_29 = arith.constant dense<0.000000e+00> : vector<32xf32>
    %37 = vector.multi_reduction <add>, %36, %cst_29 [1] : vector<32x32xf32> to vector<32xf32>
    %38 = vector.shape_cast %37 : vector<32xf32> to vector<32x1xf32>
    %cst_30 = arith.constant 3.200000e+01 : f32
    %39 = vector.broadcast %cst_30 : f32 to vector<32x1xf32>
    %40 = arith.divf %38, %39 : vector<32x1xf32>
    %cst_31 = arith.constant 9.99999974E-6 : f32
    %41 = vector.broadcast %cst_31 : f32 to vector<32x1xf32>
    %42 = arith.addf %40, %41 : vector<32x1xf32>
    %43 = math.rsqrt %42 : vector<32x1xf32>
    %44 = vector.broadcast %43 : vector<32x1xf32> to vector<32x32xf32>
    %45 = arith.mulf %35, %44 : vector<32x32xf32>
    %c0_32 = arith.constant 0 : index
    %c0_33 = arith.constant 0 : index
    %46 = vector.load %arg12[%c0_32, %c0_33] : memref<1x32xf32, #tpu.memory_space<vmem>>, vector<1x32xf32>
    %47 = vector.broadcast %46 : vector<1x32xf32> to vector<32x32xf32>
    %48 = arith.mulf %45, %47 : vector<32x32xf32>
    %c0_34 = arith.constant 0 : index
    %c0_35 = arith.constant 0 : index
    %49 = vector.load %arg13[%c0_34, %c0_35] : memref<1x32xf32, #tpu.memory_space<vmem>>, vector<1x32xf32>
    %50 = vector.broadcast %49 : vector<1x32xf32> to vector<32x32xf32>
    %51 = arith.addf %48, %50 : vector<32x32xf32>
    %52 = arith.extf %2 : vector<32x32xbf16> to vector<32x32xf32>
    %53 = arith.addf %51, %52 : vector<32x32xf32>
    %c0_36 = arith.constant 0 : index
    %c0_37 = arith.constant 0 : index
    %54 = vector.load %arg14[%c0_36, %c0_37] : memref<32x32xf32, #tpu.memory_space<vmem>>, vector<32x32xf32>
    tpu.vector_store %arg14[%c0_36, %c0_37], %53 {strides = array<i32>} : memref<32x32xf32, #tpu.memory_space<vmem>>, vector<32x32xf32>,
    return
  }
  func.func @transform_0(%arg0: i32) -> (i32, i32) {
    %c0_i32 = arith.constant 0 : i32
    %c0_i32_0 = arith.constant 0 : i32
    return %arg0, %c0_i32 : i32, i32
  }
  func.func @transform_1(%arg0: i32) -> (i32, i32) {
    %c0_i32 = arith.constant 0 : i32
    %c0_i32_0 = arith.constant 0 : i32
    return %arg0, %c0_i32 : i32, i32
  }
  func.func @transform_2(%arg0: i32) -> (i32, i32) {
    %c0_i32 = arith.constant 0 : i32
    %c0_i32_0 = arith.constant 0 : i32
    return %arg0, %c0_i32 : i32, i32
  }
  func.func @transform_3(%arg0: i32) -> (i32, i32) {
    %c0_i32 = arith.constant 0 : i32
    %c0_i32_0 = arith.constant 0 : i32
    %c0_i32_1 = arith.constant 0 : i32
    return %c0_i32, %c0_i32_0 : i32, i32
  }
  func.func @transform_4(%arg0: i32) -> (i32, i32) {
    %c0_i32 = arith.constant 0 : i32
    %c0_i32_0 = arith.constant 0 : i32
    %c0_i32_1 = arith.constant 0 : i32
    return %c0_i32, %c0_i32_0 : i32, i32
  }
  func.func @transform_5(%arg0: i32) -> (i32, i32) {
    %c0_i32 = arith.constant 0 : i32
    %c0_i32_0 = arith.constant 0 : i32
    %c0_i32_1 = arith.constant 0 : i32
    return %c0_i32, %c0_i32_0 : i32, i32
  }
  func.func @transform_6(%arg0: i32) -> (i32, i32) {
    %c0_i32 = arith.constant 0 : i32
    %c0_i32_0 = arith.constant 0 : i32
    %c0_i32_1 = arith.constant 0 : i32
    return %c0_i32, %c0_i32_0 : i32, i32
  }
  func.func @transform_7(%arg0: i32) -> (i32, i32) {
    %c0_i32 = arith.constant 0 : i32
    %c0_i32_0 = arith.constant 0 : i32
    %c0_i32_1 = arith.constant 0 : i32
    return %c0_i32, %c0_i32_0 : i32, i32
  }
  func.func @transform_8(%arg0: i32) -> (i32, i32) {
    %c0_i32 = arith.constant 0 : i32
    %c0_i32_0 = arith.constant 0 : i32
    %c0_i32_1 = arith.constant 0 : i32
    return %c0_i32, %c0_i32_0 : i32, i32
  }
  func.func @transform_9(%arg0: i32) -> (i32, i32) {
    %c0_i32 = arith.constant 0 : i32
    %c0_i32_0 = arith.constant 0 : i32
    %c0_i32_1 = arith.constant 0 : i32
    return %c0_i32, %c0_i32_0 : i32, i32
  }
  func.func @transform_10(%arg0: i32) -> (i32, i32) {
    %c0_i32 = arith.constant 0 : i32
    %c0_i32_0 = arith.constant 0 : i32
    %c0_i32_1 = arith.constant 0 : i32
    return %c0_i32, %c0_i32_0 : i32, i32
  }
  func.func @transform_11(%arg0: i32) -> (i32, i32) {
    %c0_i32 = arith.constant 0 : i32
    %c0_i32_0 = arith.constant 0 : i32
    %c0_i32_1 = arith.constant 0 : i32
    return %c0_i32, %c0_i32_0 : i32, i32
  }
  func.func @transform_12(%arg0: i32) -> (i32, i32) {
    %c0_i32 = arith.constant 0 : i32
    %c0_i32_0 = arith.constant 0 : i32
    %c0_i32_1 = arith.constant 0 : i32
    return %c0_i32, %c0_i32_0 : i32, i32
  }
  func.func @transform_13(%arg0: i32) -> (i32, i32) {
    %c0_i32 = arith.constant 0 : i32
    %c0_i32_0 = arith.constant 0 : i32
    return %arg0, %c0_i32 : i32, i32
  }
}

</mosaic_0001>

<llo_original>
// kernel: tpu_custom_call.1
$region0: #{tpu_custom_call.1}
  #allocation0 [shape = 'u32[]', space=smem, size = 0x4, offset = 0x4, fixed_abs, tag = 'smem constant byte address 0x4 - core index']
  #allocation1 [shape = 'u32[144,128]{1,0:T(1,128)}', space=vmem, size = 0x12000, scoped, tag = 'internal scratch']
  %s0 = inlined_call_operand.vmem [shape: bf16[64,32], index: 0, kind: input, shape index: {}]
  %s1 = inlined_call_operand.vmem [shape: bf16[64,32], index: 1, kind: input, shape index: {}]
  %s2 = inlined_call_operand.vmem [shape: bf16[64,32], index: 2, kind: input, shape index: {}]
  %s3 = inlined_call_operand.vmem [shape: bf16[32,128], index: 3, kind: input, shape index: {}]
  %s4 = inlined_call_operand.vmem [shape: bf16[32,128], index: 4, kind: input, shape index: {}]
  %s5 = inlined_call_operand.vmem [shape: bf16[32,128], index: 5, kind: input, shape index: {}]
  %s6 = inlined_call_operand.vmem [shape: f32[1,128], index: 6, kind: input, shape index: {}]
  %s7 = inlined_call_operand.vmem [shape: bf16[128,128], index: 7, kind: input, shape index: {}]
  %s8 = inlined_call_operand.vmem [shape: f32[1,128], index: 8, kind: input, shape index: {}]
  %s9 = inlined_call_operand.vmem [shape: bf16[128,32], index: 9, kind: input, shape index: {}]
  %s10 = inlined_call_operand.vmem [shape: f32[1,32], index: 10, kind: input, shape index: {}]
  %s11 = inlined_call_operand.vmem [shape: f32[1,32], index: 11, kind: input, shape index: {}]
  %s12 = inlined_call_operand.vmem [shape: f32[1,32], index: 12, kind: input, shape index: {}]
  %s13 = inlined_call_operand.vmem [shape: f32[64,32], index: 13, kind: output, shape index: {}]
  %s14 = sld [smem:[#allocation0]]
  $region85: #{tpu_custom_call.1} parent=0
    _
  %s16 = ssub.s32 1, %s14
  %s17 = scalar_select 0, %s16, %s14
  loop: start=0, step=1, limit=4
  $region2: #{tpu_custom_call.1} parent=0 // loop_pre_header
    _
  $region3: #{tpu_custom_call.1} parent=0 // loop_header
    %s19 = sphi 0, %s23
    %p20 = scmp.ge.s32.totalorder %s19, 4
    %s29 = sphi 0, %s31
    %s32 = sphi 0, %s29
    %s33 = sphi 0, %s32
    %s49 = sphi 0, %s33
    %s55 = sphi 0, %s57
    %s58 = sphi 0, %s55
    %s59 = sphi 0, %s58
    %s75 = sphi 0, %s59
    %s81 = sphi 0, %s83
    %s84 = sphi 0, %s81
    %s85 = sphi 0, %s84
    %s101 = sphi 0, %s85
    %s105 = sphi 0, %s105
    %s107 = sphi 0, %s105
    %s108 = sphi 0, %s107
    %s122 = sphi 0, %s108
    %s126 = sphi 0, %s126
    %s128 = sphi 0, %s126
    %s129 = sphi 0, %s128
    %s143 = sphi 0, %s129
    %s147 = sphi 0, %s147
    %s149 = sphi 0, %s147
    %s150 = sphi 0, %s149
    %s164 = sphi 0, %s150
    %s168 = sphi 0, %s168
    %s170 = sphi 0, %s168
    %s171 = sphi 0, %s170
    %s185 = sphi 0, %s171
    %s189 = sphi 0, %s189
    %s191 = sphi 0, %s189
    %s192 = sphi 0, %s191
    %s206 = sphi 0, %s192
    %s210 = sphi 0, %s210
    %s212 = sphi 0, %s210
    %s213 = sphi 0, %s212
    %s227 = sphi 0, %s213
    %s231 = sphi 0, %s231
    %s233 = sphi 0, %s231
    %s234 = sphi 0, %s233
    %s248 = sphi 0, %s234
    %s252 = sphi 0, %s252
    %s254 = sphi 0, %s252
    %s255 = sphi 0, %s254
    %s269 = sphi 0, %s255
    %s273 = sphi 0, %s273
    %s275 = sphi 0, %s273
    %s276 = sphi 0, %s275
    %s290 = sphi 0, %s276
    %s294 = sphi 0, %s294
    %s296 = sphi 0, %s294
    %s297 = sphi 0, %s296
    %s311 = sphi 0, %s297
    %s317 = sphi 0, %s319
    %s320 = sphi 0, %s317
    %s321 = sphi 0, %s320
    %s337 = sphi 0, %s321
  $region4: #{tpu_custom_call.1} parent=0 // loop_header_branch
    %22 = sbr.rel (%p20) target = $region8
  $region5: #{tpu_custom_call.1} parent=0 // loop_body
    %s24 = ssub.s32 %s19, 1
    %s25 = ssub.s32 %s19, 2
    %s26 = sadd.s32 %s19, 1
    %s27 = ssub.s32 %s19, %s26
    %p28 = scmp.eq.s32.totalorder %s27, 0
    %s30 = sadd.s32 %s29, 1
    %s31 = scalar_select %p28, %s29, %s30
    %p34 = pneg %p28
    %p35 = scmp.eq.s32.totalorder %s19, 1
    %p36 = por %p34, %p35
    %p37 = scmp.ne.s32.totalorder %s29, %s32
    %p38 = scmp.eq.s32.totalorder %s19, 0
    %p39 = por %p37, %p38
    %p40 = scmp.ne.s32.totalorder %s29, %s32
    %p41 = scmp.eq.s32.totalorder %s24, 1
    %p42 = por %p40, %p41
    %p43 = scmp.ne.s32.totalorder %s32, %s33
    %p44 = scmp.eq.s32.totalorder %s24, 0
    %p45 = por %p43, %p44
    %p46 = scmp.ne.s32.totalorder %s32, %s33
    %p47 = scmp.eq.s32.totalorder %s25, 1
    %p48 = por %p46, %p47
    %p50 = scmp.ne.s32.totalorder %s33, %s49
    %p51 = scmp.eq.s32.totalorder %s25, 0
    %p52 = por %p50, %p51
    %s53 = ssub.s32 %s19, %s26
    %p54 = scmp.eq.s32.totalorder %s53, 0
    %s56 = sadd.s32 %s55, 1
    %s57 = scalar_select %p54, %s55, %s56
    %p60 = pneg %p54
    %p61 = scmp.eq.s32.totalorder %s19, 1
    %p62 = por %p60, %p61
    %p63 = scmp.ne.s32.totalorder %s55, %s58
    %p64 = scmp.eq.s32.totalorder %s19, 0
    %p65 = por %p63, %p64
    %p66 = scmp.ne.s32.totalorder %s55, %s58
    %p67 = scmp.eq.s32.totalorder %s24, 1
    %p68 = por %p66, %p67
    %p69 = scmp.ne.s32.totalorder %s58, %s59
    %p70 = scmp.eq.s32.totalorder %s24, 0
    %p71 = por %p69, %p70
    %p72 = scmp.ne.s32.totalorder %s58, %s59
    %p73 = scmp.eq.s32.totalorder %s25, 1
    %p74 = por %p72, %p73
    %p76 = scmp.ne.s32.totalorder %s59, %s75
    %p77 = scmp.eq.s32.totalorder %s25, 0
    %p78 = por %p76, %p77
    %s79 = ssub.s32 %s19, %s26
    %p80 = scmp.eq.s32.totalorder %s79, 0
    %s82 = sadd.s32 %s81, 1
    %s83 = scalar_select %p80, %s81, %s82
    %p86 = pneg %p80
    %p87 = scmp.eq.s32.totalorder %s19, 1
    %p88 = por %p86, %p87
    %p89 = scmp.ne.s32.totalorder %s81, %s84
    %p90 = scmp.eq.s32.totalorder %s19, 0
    %p91 = por %p89, %p90
    %p92 = scmp.ne.s32.totalorder %s81, %s84
    %p93 = scmp.eq.s32.totalorder %s24, 1
    %p94 = por %p92, %p93
    %p95 = scmp.ne.s32.totalorder %s84, %s85
    %p96 = scmp.eq.s32.totalorder %s24, 0
    %p97 = por %p95, %p96
    %p98 = scmp.ne.s32.totalorder %s84, %s85
    %p99 = scmp.eq.s32.totalorder %s25, 1
    %p100 = por %p98, %p99
    %p102 = scmp.ne.s32.totalorder %s85, %s101
    %p103 = scmp.eq.s32.totalorder %s25, 0
    %p104 = por %p102, %p103
    %s106 = sadd.s32 %s105, 1
    %p109 = scmp.eq.s32.totalorder %s19, 1
    %p110 = scmp.ne.s32.totalorder %s105, %s107
    %p111 = scmp.eq.s32.totalorder %s19, 0
    %p112 = por %p110, %p111
    %p113 = scmp.ne.s32.totalorder %s105, %s107
    %p114 = scmp.eq.s32.totalorder %s24, 1
    %p115 = por %p113, %p114
    %p116 = scmp.ne.s32.totalorder %s107, %s108
    %p117 = scmp.eq.s32.totalorder %s24, 0
    %p118 = por %p116, %p117
    %p119 = scmp.ne.s32.totalorder %s107, %s108
    %p120 = scmp.eq.s32.totalorder %s25, 1
    %p121 = por %p119, %p120
    %p123 = scmp.ne.s32.totalorder %s108, %s122
    %p124 = scmp.eq.s32.totalorder %s25, 0
    %p125 = por %p123, %p124
    %s127 = sadd.s32 %s126, 1
    %p130 = scmp.eq.s32.totalorder %s19, 1
    %p131 = scmp.ne.s32.totalorder %s126, %s128
    %p132 = scmp.eq.s32.totalorder %s19, 0
    %p133 = por %p131, %p132
    %p134 = scmp.ne.s32.totalorder %s126, %s128
    %p135 = scmp.eq.s32.totalorder %s24, 1
    %p136 = por %p134, %p135
    %p137 = scmp.ne.s32.totalorder %s128, %s129
    %p138 = scmp.eq.s32.totalorder %s24, 0
    %p139 = por %p137, %p138
    %p140 = scmp.ne.s32.totalorder %s128, %s129
    %p141 = scmp.eq.s32.totalorder %s25, 1
    %p142 = por %p140, %p141
    %p144 = scmp.ne.s32.totalorder %s129, %s143
    %p145 = scmp.eq.s32.totalorder %s25, 0
    %p146 = por %p144, %p145
    %s148 = sadd.s32 %s147, 1
    %p151 = scmp.eq.s32.totalorder %s19, 1
    %p152 = scmp.ne.s32.totalorder %s147, %s149
    %p153 = scmp.eq.s32.totalorder %s19, 0
    %p154 = por %p152, %p153
    %p155 = scmp.ne.s32.totalorder %s147, %s149
    %p156 = scmp.eq.s32.totalorder %s24, 1
    %p157 = por %p155, %p156
    %p158 = scmp.ne.s32.totalorder %s149, %s150
    %p159 = scmp.eq.s32.totalorder %s24, 0
    %p160 = por %p158, %p159
    %p161 = scmp.ne.s32.totalorder %s149, %s150
    %p162 = scmp.eq.s32.totalorder %s25, 1
    %p163 = por %p161, %p162
    %p165 = scmp.ne.s32.totalorder %s150, %s164
    %p166 = scmp.eq.s32.totalorder %s25, 0
    %p167 = por %p165, %p166
    %s169 = sadd.s32 %s168, 1
    %p172 = scmp.eq.s32.totalorder %s19, 1
    %p173 = scmp.ne.s32.totalorder %s168, %s170
    %p174 = scmp.eq.s32.totalorder %s19, 0
    %p175 = por %p173, %p174
    %p176 = scmp.ne.s32.totalorder %s168, %s170
    %p177 = scmp.eq.s32.totalorder %s24, 1
    %p178 = por %p176, %p177
    %p179 = scmp.ne.s32.totalorder %s170, %s171
    %p180 = scmp.eq.s32.totalorder %s24, 0
    %p181 = por %p179, %p180
    %p182 = scmp.ne.s32.totalorder %s170, %s171
    %p183 = scmp.eq.s32.totalorder %s25, 1
    %p184 = por %p182, %p183
    %p186 = scmp.ne.s32.totalorder %s171, %s185
    %p187 = scmp.eq.s32.totalorder %s25, 0
    %p188 = por %p186, %p187
    %s190 = sadd.s32 %s189, 1
    %p193 = scmp.eq.s32.totalorder %s19, 1
    %p194 = scmp.ne.s32.totalorder %s189, %s191
    %p195 = scmp.eq.s32.totalorder %s19, 0
    %p196 = por %p194, %p195
    %p197 = scmp.ne.s32.totalorder %s189, %s191
    %p198 = scmp.eq.s32.totalorder %s24, 1
    %p199 = por %p197, %p198
    %p200 = scmp.ne.s32.totalorder %s191, %s192
    %p201 = scmp.eq.s32.totalorder %s24, 0
    %p202 = por %p200, %p201
    %p203 = scmp.ne.s32.totalorder %s191, %s192
    %p204 = scmp.eq.s32.totalorder %s25, 1
    %p205 = por %p203, %p204
    %p207 = scmp.ne.s32.totalorder %s192, %s206
    %p208 = scmp.eq.s32.totalorder %s25, 0
    %p209 = por %p207, %p208
    %s211 = sadd.s32 %s210, 1
    %p214 = scmp.eq.s32.totalorder %s19, 1
    %p215 = scmp.ne.s32.totalorder %s210, %s212
    %p216 = scmp.eq.s32.totalorder %s19, 0
    %p217 = por %p215, %p216
    %p218 = scmp.ne.s32.totalorder %s210, %s212
    %p219 = scmp.eq.s32.totalorder %s24, 1
    %p220 = por %p218, %p219
    %p221 = scmp.ne.s32.totalorder %s212, %s213
    %p222 = scmp.eq.s32.totalorder %s24, 0
    %p223 = por %p221, %p222
    %p224 = scmp.ne.s32.totalorder %s212, %s213
    %p225 = scmp.eq.s32.totalorder %s25, 1
    %p226 = por %p224, %p225
    %p228 = scmp.ne.s32.totalorder %s213, %s227
    %p229 = scmp.eq.s32.totalorder %s25, 0
    %p230 = por %p228, %p229
    %s232 = sadd.s32 %s231, 1
    %p235 = scmp.eq.s32.totalorder %s19, 1
    %p236 = scmp.ne.s32.totalorder %s231, %s233
    %p237 = scmp.eq.s32.totalorder %s19, 0
    %p238 = por %p236, %p237
    %p239 = scmp.ne.s32.totalorder %s231, %s233
    %p240 = scmp.eq.s32.totalorder %s24, 1
    %p241 = por %p239, %p240
    %p242 = scmp.ne.s32.totalorder %s233, %s234
    %p243 = scmp.eq.s32.totalorder %s24, 0
    %p244 = por %p242, %p243
    %p245 = scmp.ne.s32.totalorder %s233, %s234
    %p246 = scmp.eq.s32.totalorder %s25, 1
    %p247 = por %p245, %p246
    %p249 = scmp.ne.s32.totalorder %s234, %s248
    %p250 = scmp.eq.s32.totalorder %s25, 0
    %p251 = por %p249, %p250
    %s253 = sadd.s32 %s252, 1
    %p256 = scmp.eq.s32.totalorder %s19, 1
    %p257 = scmp.ne.s32.totalorder %s252, %s254
    %p258 = scmp.eq.s32.totalorder %s19, 0
    %p259 = por %p257, %p258
    %p260 = scmp.ne.s32.totalorder %s252, %s254
    %p261 = scmp.eq.s32.totalorder %s24, 1
    %p262 = por %p260, %p261
    %p263 = scmp.ne.s32.totalorder %s254, %s255
    %p264 = scmp.eq.s32.totalorder %s24, 0
    %p265 = por %p263, %p264
    %p266 = scmp.ne.s32.totalorder %s254, %s255
    %p267 = scmp.eq.s32.totalorder %s25, 1
    %p268 = por %p266, %p267
    %p270 = scmp.ne.s32.totalorder %s255, %s269
    %p271 = scmp.eq.s32.totalorder %s25, 0
    %p272 = por %p270, %p271
    %s274 = sadd.s32 %s273, 1
    %p277 = scmp.eq.s32.totalorder %s19, 1
    %p278 = scmp.ne.s32.totalorder %s273, %s275
    %p279 = scmp.eq.s32.totalorder %s19, 0
    %p280 = por %p278, %p279
    %p281 = scmp.ne.s32.totalorder %s273, %s275
    %p282 = scmp.eq.s32.totalorder %s24, 1
    %p283 = por %p281, %p282
    %p284 = scmp.ne.s32.totalorder %s275, %s276
    %p285 = scmp.eq.s32.totalorder %s24, 0
    %p286 = por %p284, %p285
    %p287 = scmp.ne.s32.totalorder %s275, %s276
    %p288 = scmp.eq.s32.totalorder %s25, 1
    %p289 = por %p287, %p288
    %p291 = scmp.ne.s32.totalorder %s276, %s290
    %p292 = scmp.eq.s32.totalorder %s25, 0
    %p293 = por %p291, %p292
    %s295 = sadd.s32 %s294, 1
    %p298 = scmp.eq.s32.totalorder %s19, 1
    %p299 = scmp.ne.s32.totalorder %s294, %s296
    %p300 = scmp.eq.s32.totalorder %s19, 0
    %p301 = por %p299, %p300
    %p302 = scmp.ne.s32.totalorder %s294, %s296
    %p303 = scmp.eq.s32.totalorder %s24, 1
    %p304 = por %p302, %p303
    %p305 = scmp.ne.s32.totalorder %s296, %s297
    %p306 = scmp.eq.s32.totalorder %s24, 0
    %p307 = por %p305, %p306
    %p308 = scmp.ne.s32.totalorder %s296, %s297
    %p309 = scmp.eq.s32.totalorder %s25, 1
    %p310 = por %p308, %p309
    %p312 = scmp.ne.s32.totalorder %s297, %s311
    %p313 = scmp.eq.s32.totalorder %s25, 0
    %p314 = por %p312, %p313
    %s315 = ssub.s32 %s19, %s26
    %p316 = scmp.eq.s32.totalorder %s315, 0
    %s318 = sadd.s32 %s317, 1
    %s319 = scalar_select %p316, %s317, %s318
    %p322 = pneg %p316
    %p323 = scmp.eq.s32.totalorder %s19, 1
    %p324 = por %p322, %p323
    %p325 = scmp.ne.s32.totalorder %s317, %s320
    %p326 = scmp.eq.s32.totalorder %s19, 0
    %p327 = por %p325, %p326
    %p328 = scmp.ne.s32.totalorder %s317, %s320
    %p329 = scmp.eq.s32.totalorder %s24, 1
    %p330 = por %p328, %p329
    %p331 = scmp.ne.s32.totalorder %s320, %s321
    %p332 = scmp.eq.s32.totalorder %s24, 0
    %p333 = por %p331, %p332
    %p334 = scmp.ne.s32.totalorder %s320, %s321
    %p335 = scmp.eq.s32.totalorder %s25, 1
    %p336 = por %p334, %p335
    %p338 = scmp.ne.s32.totalorder %s321, %s337
    %p339 = scmp.eq.s32.totalorder %s25, 0
    %p340 = por %p338, %p339
    %p341 = scmp.le.s32.totalorder 1, %s19
    %p342 = scmp.lt.s32.totalorder %s19, 3
    %p343 = pnand %p341, %p342
    %p344 = pneg %p343
    // Predicated region
    $region9: #{tpu_custom_call.1} parent=5 // pred_check
      _
    $region10: #{tpu_custom_call.1} parent=5 // pred_check_branch
      %346 = sbr.rel (%p343) target = $region12
    $region11: #{tpu_custom_call.1} parent=5 // pred_region
      %s347 = ssub.s32 %s19, 1
      // Predicated region
      $region13: #{tpu_custom_call.1} parent=11 // pred_check
        %p348 = pneg %p118
      $region14: #{tpu_custom_call.1} parent=11 // pred_check_branch
        %350 = sbr.rel (%p348) target = $region16
      $region15: #{tpu_custom_call.1} parent=11 // pred_region
        _
      $region16: #{tpu_custom_call.1} parent=11 // pred_fallthru
        _
      // Predicated region
      $region17: #{tpu_custom_call.1} parent=11 // pred_check
        %p351 = pneg %p139
      $region18: #{tpu_custom_call.1} parent=11 // pred_check_branch
        %353 = sbr.rel (%p351) target = $region20
      $region19: #{tpu_custom_call.1} parent=11 // pred_region
        _
      $region20: #{tpu_custom_call.1} parent=11 // pred_fallthru
        _
      // Predicated region
      $region21: #{tpu_custom_call.1} parent=11 // pred_check
        %p354 = pneg %p160
      $region22: #{tpu_custom_call.1} parent=11 // pred_check_branch
        %356 = sbr.rel (%p354) target = $region24
      $region23: #{tpu_custom_call.1} parent=11 // pred_region
        _
      $region24: #{tpu_custom_call.1} parent=11 // pred_fallthru
        _
      // Predicated region
      $region25: #{tpu_custom_call.1} parent=11 // pred_check
        %p357 = pneg %p181
      $region26: #{tpu_custom_call.1} parent=11 // pred_check_branch
        %359 = sbr.rel (%p357) target = $region28
      $region27: #{tpu_custom_call.1} parent=11 // pred_region
        _
      $region28: #{tpu_custom_call.1} parent=11 // pred_fallthru
        _
      // Predicated region
      $region29: #{tpu_custom_call.1} parent=11 // pred_check
        %p360 = pneg %p202
      $region30: #{tpu_custom_call.1} parent=11 // pred_check_branch
        %362 = sbr.rel (%p360) target = $region32
      $region31: #{tpu_custom_call.1} parent=11 // pred_region
        _
      $region32: #{tpu_custom_call.1} parent=11 // pred_fallthru
        _
      // Predicated region
      $region33: #{tpu_custom_call.1} parent=11 // pred_check
        %p363 = pneg %p223
      $region34: #{tpu_custom_call.1} parent=11 // pred_check_branch
        %365 = sbr.rel (%p363) target = $region36
      $region35: #{tpu_custom_call.1} parent=11 // pred_region
        _
      $region36: #{tpu_custom_call.1} parent=11 // pred_fallthru
        _
      // Predicated region
      $region37: #{tpu_custom_call.1} parent=11 // pred_check
        %p366 = pneg %p244
      $region38: #{tpu_custom_call.1} parent=11 // pred_check_branch
        %368 = sbr.rel (%p366) target = $region40
      $region39: #{tpu_custom_call.1} parent=11 // pred_region
        _
      $region40: #{tpu_custom_call.1} parent=11 // pred_fallthru
        _
      // Predicated region
      $region41: #{tpu_custom_call.1} parent=11 // pred_check
        %p369 = pneg %p265
      $region42: #{tpu_custom_call.1} parent=11 // pred_check_branch
        %371 = sbr.rel (%p369) target = $region44
      $region43: #{tpu_custom_call.1} parent=11 // pred_region
        _
      $region44: #{tpu_custom_call.1} parent=11 // pred_fallthru
        _
      // Predicated region
      $region45: #{tpu_custom_call.1} parent=11 // pred_check
        %p372 = pneg %p286
      $region46: #{tpu_custom_call.1} parent=11 // pred_check_branch
        %374 = sbr.rel (%p372) target = $region48
      $region47: #{tpu_custom_call.1} parent=11 // pred_region
        _
      $region48: #{tpu_custom_call.1} parent=11 // pred_fallthru
        _
      // Predicated region
      $region49: #{tpu_custom_call.1} parent=11 // pred_check
        %p375 = pneg %p307
      $region50: #{tpu_custom_call.1} parent=11 // pred_check_branch
        %377 = sbr.rel (%p375) target = $region52
      $region51: #{tpu_custom_call.1} parent=11 // pred_region
        _
      $region52: #{tpu_custom_call.1} parent=11 // pred_fallthru
        _
    $region12: #{tpu_custom_call.1} parent=5 // pred_fallthru
      _
    %p378 = scmp.lt.s32.totalorder %s19, 2
    // Predicated region
    $region53: #{tpu_custom_call.1} parent=5 // pred_check
      %p379 = pneg %p378
    $region54: #{tpu_custom_call.1} parent=5 // pred_check_branch
      %381 = sbr.rel (%p379) target = $region56
    $region55: #{tpu_custom_call.1} parent=5 // pred_region
      // Predicated region
      $region57: #{tpu_custom_call.1} parent=55 // pred_check
        %p382 = pneg %p39
      $region58: #{tpu_custom_call.1} parent=55 // pred_check_branch
        %384 = sbr.rel (%p382) target = $region60
      $region59: #{tpu_custom_call.1} parent=55 // pred_region
        %s385 = smul.u32 4, %s19
        %p386 = scmp.lt.s32.totalorder %s385, 7
        %s387 = scalar_select %p386, %s385, 7
        %s388 = smul.addr %s387, 4
        %s389 = scalar_lea.vmem %s0, %s388
        %s390 = smul.u32 4, %s19
      $region60: #{tpu_custom_call.1} parent=55 // pred_fallthru
        _
      // Predicated region
      $region61: #{tpu_custom_call.1} parent=55 // pred_check
        %p391 = pneg %p65
      $region62: #{tpu_custom_call.1} parent=55 // pred_check_branch
        %393 = sbr.rel (%p391) target = $region64
      $region63: #{tpu_custom_call.1} parent=55 // pred_region
        %s394 = smul.u32 4, %s19
        %p395 = scmp.lt.s32.totalorder %s394, 7
        %s396 = scalar_select %p395, %s394, 7
        %s397 = smul.addr %s396, 4
        %s398 = scalar_lea.vmem %s1, %s397
        %s399 = smul.u32 4, %s19
      $region64: #{tpu_custom_call.1} parent=55 // pred_fallthru
        _
      // Predicated region
      $region65: #{tpu_custom_call.1} parent=55 // pred_check
        %p400 = pneg %p91
      $region66: #{tpu_custom_call.1} parent=55 // pred_check_branch
        %402 = sbr.rel (%p400) target = $region68
      $region67: #{tpu_custom_call.1} parent=55 // pred_region
        %s403 = smul.u32 4, %s19
        %p404 = scmp.lt.s32.totalorder %s403, 7
        %s405 = scalar_select %p404, %s403, 7
        %s406 = smul.addr %s405, 4
        %s407 = scalar_lea.vmem %s2, %s406
        %s408 = smul.u32 4, %s19
      $region68: #{tpu_custom_call.1} parent=55 // pred_fallthru
        _
    $region56: #{tpu_custom_call.1} parent=5 // pred_fallthru
      _
    %p409 = scmp.le.s32.totalorder 1, %s19
    %p410 = scmp.lt.s32.totalorder %s19, 3
    %p411 = pnand %p409, %p410
    %p412 = pneg %p411
    // Predicated region
    $region69: #{tpu_custom_call.1} parent=5 // pred_check
      _
    $region70: #{tpu_custom_call.1} parent=5 // pred_check_branch
      %414 = sbr.rel (%p411) target = $region72
    $region71: #{tpu_custom_call.1} parent=5 // pred_region
      %s415 = ssub.s32 %s19, 1
      %s416 = smul.u32 4, %s24
      %p417 = scmp.lt.s32.totalorder %s416, 7
      %s418 = scalar_select %p417, %s416, 7
      %s419 = smul.addr %s418, 4
      %s420 = scalar_lea.vmem %s0, %s419
      %p421 = pneg %p45
      %p422 = pneg %p42
      %s423 = smul.u32 4, %s24
      %p424 = scmp.lt.s32.totalorder %s423, 7
      %s425 = scalar_select %p424, %s423, 7
      %s426 = smul.addr %s425, 4
      %s427 = scalar_lea.vmem %s1, %s426
      %p428 = pneg %p71
      %p429 = pneg %p68
      %s430 = smul.u32 4, %s24
      %p431 = scmp.lt.s32.totalorder %s430, 7
      %s432 = scalar_select %p431, %s430, 7
      %s433 = smul.addr %s432, 4
      %s434 = scalar_lea.vmem %s2, %s433
      %p435 = pneg %p97
      %p436 = pneg %p94
      %p437 = pneg %p118
      %p438 = pneg %p115
      %p439 = pneg %p139
      %p440 = pneg %p136
      %p441 = pneg %p160
      %p442 = pneg %p157
      %p443 = pneg %p181
      %p444 = pneg %p178
      %p445 = pneg %p202
      %p446 = pneg %p199
      %p447 = pneg %p223
      %p448 = pneg %p220
      %p449 = pneg %p244
      %p450 = pneg %p241
      %p451 = pneg %p265
      %p452 = pneg %p262
      %p453 = pneg %p286
      %p454 = pneg %p283
      %p455 = pneg %p307
      %p456 = pneg %p304
      %p457 = pneg %p333
      %p458 = pneg %p330
      %s459 = smul.u32 4, %s24
      %p460 = scmp.lt.s32.totalorder %s459, 7
      %s461 = scalar_select %p460, %s459, 7
      %s462 = smul.addr %s461, 8
      %s463 = scalar_lea.vmem %s13, %s462
      %s464 = smul.u32 4, %s24
      %p465 = scmp.lt.s32.totalorder %s464, 7
      %s466 = scalar_select %p465, %s464, 7
      %s467 = smul.addr %s466, 4
      %s468 = scalar_lea.vmem %s0, %s467
      %s469 = smul.u32 4, %s24
      %s470 = smul.u32 4, %s24
      %p471 = scmp.lt.s32.totalorder %s470, 7
      %s472 = scalar_select %p471, %s470, 7
      %s473 = smul.addr %s472, 4
      %s474 = scalar_lea.vmem %s1, %s473
      %s475 = smul.u32 4, %s24
      %s476 = smul.u32 4, %s24
      %p477 = scmp.lt.s32.totalorder %s476, 7
      %s478 = scalar_select %p477, %s476, 7
      %s479 = smul.addr %s478, 4
      %s480 = scalar_lea.vmem %s2, %s479
      %s481 = smul.u32 4, %s24
      %s482 = smul.u32 4, %s24
      %p483 = scmp.lt.s32.totalorder %s482, 7
      %s484 = scalar_select %p483, %s482, 7
      %s485 = smul.addr %s484, 8
      %s486 = scalar_lea.vmem %s13, %s485
      %s487 = smul.u32 4, %s24
      %v489 = vld [vmem:[%s468] sm:$0xf]
      %v490 = vld [vmem:[%s468 + $0x4] sm:$0xf]
      %v491 = vld [vmem:[%s468 + $0x8] sm:$0xf]
      %v492 = vld [vmem:[%s468 + $0xc] sm:$0xf]
      %v493 = vld [vmem:[%s474] sm:$0xf]
      %v494 = vld [vmem:[%s474 + $0x4] sm:$0xf]
      %v495 = vld [vmem:[%s474 + $0x8] sm:$0xf]
      %v496 = vld [vmem:[%s474 + $0xc] sm:$0xf]
      %v497 = vld [vmem:[%s480] sm:$0xf]
      %v498 = vld [vmem:[%s480 + $0x4] sm:$0xf]
      %v499 = vld [vmem:[%s480 + $0x8] sm:$0xf]
      %v500 = vld [vmem:[%s480 + $0xc] sm:$0xf]
      %v501 = vld [vmem:[%s3] sm:$0xf]
      %v502 = vld [vmem:[%s3 + $0x4] sm:$0xf]
      %v503 = vld [vmem:[%s3 + $0x8] sm:$0xf]
      %v504 = vld [vmem:[%s3 + $0xc] sm:$0xf]
      %v505 = vld [vmem:[%s4] sm:$0xf]
      %v506 = vld [vmem:[%s4 + $0x4] sm:$0xf]
      %v507 = vld [vmem:[%s4 + $0x8] sm:$0xf]
      %v508 = vld [vmem:[%s4 + $0xc] sm:$0xf]
      %v513 = vunpack.c.l.b16 %v493
      %v514 = vunpack.c.l.b16 %v494
      %v515 = vunpack.c.l.b16 %v495
      %v516 = vunpack.c.l.b16 %v496
      %v517 = vpack.c.b16 %v514, %v513
      %v518 = vpack.c.b16 %v516, %v515
      %v523 = vunpack.c.l.b16 %v505
      %v524 = vunpack.c.l.b16 %v506
      %v525 = vunpack.c.l.b16 %v507
      %v526 = vunpack.c.l.b16 %v508
      %v527 = vpack.c.b16 %v524, %v523
      %v528 = vpack.c.b16 %v526, %v525
      %vm531 = vcmask 261120
      %v533 = vsel %vm531, %v517, 0
      %v536 = vsel %vm531, %v518, 0
      %538 = vmatprep.subr.bf16.mxu0 0
      %539 = vmatpush1.bf16.msra.mxu0 0
      %540 = vmatprep.subr.bf16.mxu0 0
      %541 = vmatpush1.bf16.msra.mxu0 0
      %542 = vmatprep.subr.bf16.mxu0 0
      %543 = vmatpush1.bf16.msra.mxu0 0
      %544 = vmatprep.subr.bf16.mxu0 0
      %545 = vmatpush1.bf16.msra.mxu0 0
      %546 = vmatprep.subr.bf16.mxu0 0
      %547 = vmatpush1.bf16.msra.mxu0 0
      %548 = vmatprep.subr.bf16.mxu0 0
      %549 = vmatpush1.bf16.msra.mxu0 0
      %550 = vmatprep.subr.bf16.mxu0 0
      %551 = vmatpush1.bf16.msra.mxu0 %v528
      %552 = vmatprep.subr.bf16.mxu0 0
      %553 = vmatpush1.bf16.msra.mxu0 %v527
      %554 = vmatprep.subr.bf16.mxu0 0
      %555 = vmatpush2.bf16.msra.mxu0 0
      %556 = vmatprep.subr.bf16.mxu0 0
      %557 = vmatpush2.bf16.msra.mxu0 0
      %558 = vmatprep.subr.bf16.mxu0 0
      %559 = vmatpush2.bf16.msra.mxu0 0
      %560 = vmatprep.subr.bf16.mxu0 0
      %561 = vmatpush2.bf16.msra.mxu0 0
      %562 = vmatprep.subr.bf16.mxu0 0
      %563 = vmatpush2.bf16.msra.mxu0 0
      %564 = vmatprep.subr.bf16.mxu0 0
      %565 = vmatpush2.bf16.msra.mxu0 0
      %566 = vmatprep.subr.bf16.mxu0 0
      %567 = vmatpush2.bf16.msra.mxu0 0
      %568 = vmatprep.subr.bf16.mxu0 0
      %569 = vmatpush2.bf16.msra.mxu0 0
      %570 = vmatprep.mubr.bf16.mxu0 0
      %571 = vmatmul.mubr.bf16.gmra.mxu0 %v533
      %v572 = vpop.f32.mrf.mxu0
      %v573 = vadd.f32 0.0, %v572
      %v574 = vpop.f32.mrf.mxu0
      %v575 = vpop.f32.mrf.mxu0
      %v576 = vadd.f32 0.0, %v575
      %v577 = vpop.f32.mrf.mxu0
      %578 = vmatprep.mubr.bf16.mxu0 0
      %579 = vmatmul.mubr.bf16.gmra.mxu0 %v536
      %v580 = vpop.f32.mrf.mxu0
      %v581 = vadd.f32 0.0, %v580
      %v582 = vpop.f32.mrf.mxu0
      %v583 = vpop.f32.mrf.mxu0
      %v584 = vadd.f32 0.0, %v583
      %v585 = vpop.f32.mrf.mxu0
      %586 = vdwg.mxu0
      %v591 = vunpack.c.l.b16 %v489
      %v592 = vunpack.c.l.b16 %v490
      %v593 = vunpack.c.l.b16 %v491
      %v594 = vunpack.c.l.b16 %v492
      %v595 = vpack.c.b16 %v592, %v591
      %v596 = vpack.c.b16 %v594, %v593
      %v601 = vunpack.c.l.b16 %v501
      %v602 = vunpack.c.l.b16 %v502
      %v603 = vunpack.c.l.b16 %v503
      %v604 = vunpack.c.l.b16 %v504
      %v605 = vpack.c.b16 %v602, %v601
      %v606 = vpack.c.b16 %v604, %v603
      %v610 = vsel %vm531, %v595, 0
      %v613 = vsel %vm531, %v596, 0
      %615 = vmatprep.subr.bf16.mxu0 0
      %616 = vmatpush1.bf16.msra.mxu0 0
      %617 = vmatprep.subr.bf16.mxu0 0
      %618 = vmatpush1.bf16.msra.mxu0 0
      %619 = vmatprep.subr.bf16.mxu0 0
      %620 = vmatpush1.bf16.msra.mxu0 0
      %621 = vmatprep.subr.bf16.mxu0 0
      %622 = vmatpush1.bf16.msra.mxu0 0
      %623 = vmatprep.subr.bf16.mxu0 0
      %624 = vmatpush1.bf16.msra.mxu0 0
      %625 = vmatprep.subr.bf16.mxu0 0
      %626 = vmatpush1.bf16.msra.mxu0 0
      %627 = vmatprep.subr.bf16.mxu0 0
      %628 = vmatpush1.bf16.msra.mxu0 %v606
      %629 = vmatprep.subr.bf16.mxu0 0
      %630 = vmatpush1.bf16.msra.mxu0 %v605
      %631 = vmatprep.subr.bf16.mxu0 0
      %632 = vmatpush2.bf16.msra.mxu0 0
      %633 = vmatprep.subr.bf16.mxu0 0
      %634 = vmatpush2.bf16.msra.mxu0 0
      %635 = vmatprep.subr.bf16.mxu0 0
      %636 = vmatpush2.bf16.msra.mxu0 0
      %637 = vmatprep.subr.bf16.mxu0 0
      %638 = vmatpush2.bf16.msra.mxu0 0
      %639 = vmatprep.subr.bf16.mxu0 0
      %640 = vmatpush2.bf16.msra.mxu0 0
      %641 = vmatprep.subr.bf16.mxu0 0
      %642 = vmatpush2.bf16.msra.mxu0 0
      %643 = vmatprep.subr.bf16.mxu0 0
      %644 = vmatpush2.bf16.msra.mxu0 0
      %645 = vmatprep.subr.bf16.mxu0 0
      %646 = vmatpush2.bf16.msra.mxu0 0
      %647 = vmatprep.mubr.bf16.mxu0 0
      %648 = vmatmul.mubr.bf16.gmra.mxu0 %v610
      %v649 = vpop.f32.mrf.mxu0
      %v650 = vadd.f32 %v573, %v649
      %v651 = vpop.f32.mrf.mxu0
      %v652 = vpop.f32.mrf.mxu0
      %v653 = vadd.f32 %v576, %v652
      %v654 = vpop.f32.mrf.mxu0
      %655 = vmatprep.mubr.bf16.mxu0 0
      %656 = vmatmul.mubr.bf16.gmra.mxu0 %v613
      %v657 = vpop.f32.mrf.mxu0
      %v658 = vadd.f32 %v581, %v657
      %v659 = vpop.f32.mrf.mxu0
      %v660 = vpop.f32.mrf.mxu0
      %v661 = vadd.f32 %v584, %v660
      %v662 = vpop.f32.mrf.mxu0
      %663 = vdwg.mxu0
      %v664 = vld [vmem:[%s5] sm:$0xf]
      %v665 = vld [vmem:[%s5 + $0x4] sm:$0xf]
      %v666 = vld [vmem:[%s5 + $0x8] sm:$0xf]
      %v667 = vld [vmem:[%s5 + $0xc] sm:$0xf]
      %v672 = vunpack.c.l.b16 %v497
      %v673 = vunpack.c.l.b16 %v498
      %v674 = vunpack.c.l.b16 %v499
      %v675 = vunpack.c.l.b16 %v500
      %v676 = vpack.c.b16 %v673, %v672
      %v677 = vpack.c.b16 %v675, %v674
      %v682 = vunpack.c.l.b16 %v664
      %v683 = vunpack.c.l.b16 %v665
      %v684 = vunpack.c.l.b16 %v666
      %v685 = vunpack.c.l.b16 %v667
      %v686 = vpack.c.b16 %v683, %v682
      %v687 = vpack.c.b16 %v685, %v684
      %v691 = vsel %vm531, %v676, 0
      %v694 = vsel %vm531, %v677, 0
      %696 = vmatprep.subr.bf16.mxu0 0
      %697 = vmatpush1.bf16.msra.mxu0 0
      %698 = vmatprep.subr.bf16.mxu0 0
      %699 = vmatpush1.bf16.msra.mxu0 0
      %700 = vmatprep.subr.bf16.mxu0 0
      %701 = vmatpush1.bf16.msra.mxu0 0
      %702 = vmatprep.subr.bf16.mxu0 0
      %703 = vmatpush1.bf16.msra.mxu0 0
      %704 = vmatprep.subr.bf16.mxu0 0
      %705 = vmatpush1.bf16.msra.mxu0 0
      %706 = vmatprep.subr.bf16.mxu0 0
      %707 = vmatpush1.bf16.msra.mxu0 0
      %708 = vmatprep.subr.bf16.mxu0 0
      %709 = vmatpush1.bf16.msra.mxu0 %v687
      %710 = vmatprep.subr.bf16.mxu0 0
      %711 = vmatpush1.bf16.msra.mxu0 %v686
      %712 = vmatprep.subr.bf16.mxu0 0
      %713 = vmatpush2.bf16.msra.mxu0 0
      %714 = vmatprep.subr.bf16.mxu0 0
      %715 = vmatpush2.bf16.msra.mxu0 0
      %716 = vmatprep.subr.bf16.mxu0 0
      %717 = vmatpush2.bf16.msra.mxu0 0
      %718 = vmatprep.subr.bf16.mxu0 0
      %719 = vmatpush2.bf16.msra.mxu0 0
      %720 = vmatprep.subr.bf16.mxu0 0
      %721 = vmatpush2.bf16.msra.mxu0 0
      %722 = vmatprep.subr.bf16.mxu0 0
      %723 = vmatpush2.bf16.msra.mxu0 0
      %724 = vmatprep.subr.bf16.mxu0 0
      %725 = vmatpush2.bf16.msra.mxu0 0
      %726 = vmatprep.subr.bf16.mxu0 0
      %727 = vmatpush2.bf16.msra.mxu0 0
      %728 = vmatprep.mubr.bf16.mxu0 0
      %729 = vmatmul.mubr.bf16.gmra.mxu0 %v691
      %v730 = vpop.f32.mrf.mxu0
      %v731 = vadd.f32 0.0, %v730
      %v732 = vpop.f32.mrf.mxu0
      %v733 = vpop.f32.mrf.mxu0
      %v734 = vadd.f32 0.0, %v733
      %v735 = vpop.f32.mrf.mxu0
      %736 = vmatprep.mubr.bf16.mxu0 0
      %737 = vmatmul.mubr.bf16.gmra.mxu0 %v694
      %v738 = vpop.f32.mrf.mxu0
      %v739 = vadd.f32 0.0, %v738
      %v740 = vpop.f32.mrf.mxu0
      %v741 = vpop.f32.mrf.mxu0
      %v742 = vadd.f32 0.0, %v741
      %v743 = vpop.f32.mrf.mxu0
      %744 = vdwg.mxu0
      %v745 = vadd.f32 %v650, %v731
      %v746 = vadd.f32 %v653, %v734
      %v747 = vadd.f32 %v658, %v739
      %v748 = vadd.f32 %v661, %v742
      %v749 = vld [vmem:[%s6] sm:$0x1]
      %v751 = vlaneseq
      %v752 = vshrl.u32 %v751, 7
      %v753 = vsub.s32 0, %v752
      %v754 = vrot.slane %v749, %v753
      %v756 = vadd.f32 %v745, %v754
      %v757 = vadd.f32 %v746, %v754
      %v758 = vadd.f32 %v747, %v754
      %v759 = vadd.f32 %v748, %v754
      %v760 = vmax.f32 %v756, 0.0
      %v761 = vmax.f32 %v757, 0.0
      %v762 = vmax.f32 %v758, 0.0
      %v763 = vmax.f32 %v759, 0.0
      %v764 = vpack.c.bf16 %v761, %v760
      %v765 = vpack.c.bf16 %v763, %v762
      %v766 = vld [vmem:[%s7] sm:$0xf]
      %v767 = vld [vmem:[%s7 + $0x4] sm:$0xf]
      %v768 = vld [vmem:[%s7 + $0x8] sm:$0xf]
      %v769 = vld [vmem:[%s7 + $0xc] sm:$0xf]
      %v770 = vld [vmem:[%s7 + $0x10] sm:$0xf]
      %v771 = vld [vmem:[%s7 + $0x14] sm:$0xf]
      %v772 = vld [vmem:[%s7 + $0x18] sm:$0xf]
      %v773 = vld [vmem:[%s7 + $0x1c] sm:$0xf]
      %v774 = vld [vmem:[%s7 + $0x20] sm:$0xf]
      %v775 = vld [vmem:[%s7 + $0x24] sm:$0xf]
      %v776 = vld [vmem:[%s7 + $0x28] sm:$0xf]
      %v777 = vld [vmem:[%s7 + $0x2c] sm:$0xf]
      %v778 = vld [vmem:[%s7 + $0x30] sm:$0xf]
      %v779 = vld [vmem:[%s7 + $0x34] sm:$0xf]
      %v780 = vld [vmem:[%s7 + $0x38] sm:$0xf]
      %v781 = vld [vmem:[%s7 + $0x3c] sm:$0xf]
      %v782 = vld [vmem:[%s8] sm:$0x1]
      %v784 = vlaneseq
      %v785 = vshrl.u32 %v784, 7
      %v786 = vsub.s32 0, %v785
      %v787 = vrot.slane %v782, %v786
      %v805 = vunpack.c.l.b16 %v766
      %v806 = vunpack.c.l.b16 %v767
      %v807 = vunpack.c.l.b16 %v768
      %v808 = vunpack.c.l.b16 %v769
      %v809 = vunpack.c.l.b16 %v770
      %v810 = vunpack.c.l.b16 %v771
      %v811 = vunpack.c.l.b16 %v772
      %v812 = vunpack.c.l.b16 %v773
      %v813 = vunpack.c.l.b16 %v774
      %v814 = vunpack.c.l.b16 %v775
      %v815 = vunpack.c.l.b16 %v776
      %v816 = vunpack.c.l.b16 %v777
      %v817 = vunpack.c.l.b16 %v778
      %v818 = vunpack.c.l.b16 %v779
      %v819 = vunpack.c.l.b16 %v780
      %v820 = vunpack.c.l.b16 %v781
      %v821 = vpack.c.b16 %v806, %v805
      %v822 = vpack.c.b16 %v808, %v807
      %v823 = vpack.c.b16 %v810, %v809
      %v824 = vpack.c.b16 %v812, %v811
      %v825 = vpack.c.b16 %v814, %v813
      %v826 = vpack.c.b16 %v816, %v815
      %v827 = vpack.c.b16 %v818, %v817
      %v828 = vpack.c.b16 %v820, %v819
      %837 = vmatprep.subr.bf16.mxu0 0
      %838 = vmatpush1.bf16.msra.mxu0 %v828
      %839 = vmatprep.subr.bf16.mxu0 0
      %840 = vmatpush1.bf16.msra.mxu0 %v827
      %841 = vmatprep.subr.bf16.mxu0 0
      %842 = vmatpush1.bf16.msra.mxu0 %v826
      %843 = vmatprep.subr.bf16.mxu0 0
      %844 = vmatpush1.bf16.msra.mxu0 %v825
      %845 = vmatprep.subr.bf16.mxu0 0
      %846 = vmatpush1.bf16.msra.mxu0 %v824
      %847 = vmatprep.subr.bf16.mxu0 0
      %848 = vmatpush1.bf16.msra.mxu0 %v823
      %849 = vmatprep.subr.bf16.mxu0 0
      %850 = vmatpush1.bf16.msra.mxu0 %v822
      %851 = vmatprep.subr.bf16.mxu0 0
      %852 = vmatpush1.bf16.msra.mxu0 %v821
      %853 = vmatprep.subr.bf16.mxu0 0
      %854 = vmatpush2.bf16.msra.mxu0 0
      %855 = vmatprep.subr.bf16.mxu0 0
      %856 = vmatpush2.bf16.msra.mxu0 0
      %857 = vmatprep.subr.bf16.mxu0 0
      %858 = vmatpush2.bf16.msra.mxu0 0
      %859 = vmatprep.subr.bf16.mxu0 0
      %860 = vmatpush2.bf16.msra.mxu0 0
      %861 = vmatprep.subr.bf16.mxu0 0
      %862 = vmatpush2.bf16.msra.mxu0 0
      %863 = vmatprep.subr.bf16.mxu0 0
      %864 = vmatpush2.bf16.msra.mxu0 0
      %865 = vmatprep.subr.bf16.mxu0 0
      %866 = vmatpush2.bf16.msra.mxu0 0
      %867 = vmatprep.subr.bf16.mxu0 0
      %868 = vmatpush2.bf16.msra.mxu0 0
      %869 = vmatprep.mubr.bf16.mxu0 0
      %870 = vmatmul.mubr.bf16.gmra.mxu0 %v764
      %v871 = vpop.f32.mrf.mxu0
      %v872 = vadd.f32 %v787, %v871
      %v873 = vpop.f32.mrf.mxu0
      %v874 = vpop.f32.mrf.mxu0
      %v875 = vadd.f32 %v787, %v874
      %v876 = vpop.f32.mrf.mxu0
      %877 = vmatprep.mubr.bf16.mxu0 0
      %878 = vmatmul.mubr.bf16.gmra.mxu0 %v765
      %v879 = vpop.f32.mrf.mxu0
      %v880 = vadd.f32 %v787, %v879
      %v881 = vpop.f32.mrf.mxu0
      %v882 = vpop.f32.mrf.mxu0
      %v883 = vadd.f32 %v787, %v882
      %v884 = vpop.f32.mrf.mxu0
      %885 = vdwg.mxu0
      %v886 = vmax.f32 %v872, 0.0
      %v887 = vmax.f32 %v875, 0.0
      %v888 = vmax.f32 %v880, 0.0
      %v889 = vmax.f32 %v883, 0.0
      %v890 = vpack.c.bf16 %v887, %v886
      %v891 = vpack.c.bf16 %v889, %v888
      %v892 = vld [vmem:[%s9] sm:$0xf]
      %v893 = vld [vmem:[%s9 + $0x4] sm:$0xf]
      %v894 = vld [vmem:[%s9 + $0x8] sm:$0xf]
      %v895 = vld [vmem:[%s9 + $0xc] sm:$0xf]
      %v896 = vld [vmem:[%s9 + $0x10] sm:$0xf]
      %v897 = vld [vmem:[%s9 + $0x14] sm:$0xf]
      %v898 = vld [vmem:[%s9 + $0x18] sm:$0xf]
      %v899 = vld [vmem:[%s9 + $0x1c] sm:$0xf]
      %v900 = vld [vmem:[%s9 + $0x20] sm:$0xf]
      %v901 = vld [vmem:[%s9 + $0x24] sm:$0xf]
      %v902 = vld [vmem:[%s9 + $0x28] sm:$0xf]
      %v903 = vld [vmem:[%s9 + $0x2c] sm:$0xf]
      %v904 = vld [vmem:[%s9 + $0x30] sm:$0xf]
      %v905 = vld [vmem:[%s9 + $0x34] sm:$0xf]
      %v906 = vld [vmem:[%s9 + $0x38] sm:$0xf]
      %v907 = vld [vmem:[%s9 + $0x3c] sm:$0xf]
      %v908 = vld [vmem:[%s10] sm:$0x1]
      %v910 = vlaneseq
      %v911 = vshrl.u32 %v910, 7
      %v912 = vsub.s32 0, %v911
      %v913 = vrot.slane %v908, %v912
      %v931 = vunpack.c.l.b16 %v892
      %v932 = vunpack.c.l.b16 %v893
      %v933 = vunpack.c.l.b16 %v894
      %v934 = vunpack.c.l.b16 %v895
      %v935 = vunpack.c.l.b16 %v896
      %v936 = vunpack.c.l.b16 %v897
      %v937 = vunpack.c.l.b16 %v898
      %v938 = vunpack.c.l.b16 %v899
      %v939 = vunpack.c.l.b16 %v900
      %v940 = vunpack.c.l.b16 %v901
      %v941 = vunpack.c.l.b16 %v902
      %v942 = vunpack.c.l.b16 %v903
      %v943 = vunpack.c.l.b16 %v904
      %v944 = vunpack.c.l.b16 %v905
      %v945 = vunpack.c.l.b16 %v906
      %v946 = vunpack.c.l.b16 %v907
      %v947 = vpack.c.b16 %v932, %v931
      %v948 = vpack.c.b16 %v934, %v933
      %v949 = vpack.c.b16 %v936, %v935
      %v950 = vpack.c.b16 %v938, %v937
      %v951 = vpack.c.b16 %v940, %v939
      %v952 = vpack.c.b16 %v942, %v941
      %v953 = vpack.c.b16 %v944, %v943
      %v954 = vpack.c.b16 %v946, %v945
      %963 = vmatprep.subr.bf16.mxu0 0
      %964 = vmatpush1.bf16.msra.mxu0 %v954
      %965 = vmatprep.subr.bf16.mxu0 0
      %966 = vmatpush1.bf16.msra.mxu0 %v953
      %967 = vmatprep.subr.bf16.mxu0 0
      %968 = vmatpush1.bf16.msra.mxu0 %v952
      %969 = vmatprep.subr.bf16.mxu0 0
      %970 = vmatpush1.bf16.msra.mxu0 %v951
      %971 = vmatprep.subr.bf16.mxu0 0
      %972 = vmatpush1.bf16.msra.mxu0 %v950
      %973 = vmatprep.subr.bf16.mxu0 0
      %974 = vmatpush1.bf16.msra.mxu0 %v949
      %975 = vmatprep.subr.bf16.mxu0 0
      %976 = vmatpush1.bf16.msra.mxu0 %v948
      %977 = vmatprep.subr.bf16.mxu0 0
      %978 = vmatpush1.bf16.msra.mxu0 %v947
      %979 = vmatprep.subr.bf16.mxu0 0
      %980 = vmatpush2.bf16.msra.mxu0 0
      %981 = vmatprep.subr.bf16.mxu0 0
      %982 = vmatpush2.bf16.msra.mxu0 0
      %983 = vmatprep.subr.bf16.mxu0 0
      %984 = vmatpush2.bf16.msra.mxu0 0
      %985 = vmatprep.subr.bf16.mxu0 0
      %986 = vmatpush2.bf16.msra.mxu0 0
      %987 = vmatprep.subr.bf16.mxu0 0
      %988 = vmatpush2.bf16.msra.mxu0 0
      %989 = vmatprep.subr.bf16.mxu0 0
      %990 = vmatpush2.bf16.msra.mxu0 0
      %991 = vmatprep.subr.bf16.mxu0 0
      %992 = vmatpush2.bf16.msra.mxu0 0
      %993 = vmatprep.subr.bf16.mxu0 0
      %994 = vmatpush2.bf16.msra.mxu0 0
      %995 = vmatprep.mubr.bf16.mxu0 0
      %996 = vmatmul.mubr.bf16.gmra.mxu0 %v890
      %v997 = vpop.f32.mrf.mxu0
      %v998 = vadd.f32 %v913, %v997
      %v999 = vpop.f32.mrf.mxu0
      %v1000 = vpop.f32.mrf.mxu0
      %v1001 = vadd.f32 %v913, %v1000
      %v1002 = vpop.f32.mrf.mxu0
      %1003 = vmatprep.mubr.bf16.mxu0 0
      %1004 = vmatmul.mubr.bf16.gmra.mxu0 %v891
      %v1005 = vpop.f32.mrf.mxu0
      %v1006 = vadd.f32 %v913, %v1005
      %v1007 = vpop.f32.mrf.mxu0
      %v1008 = vpop.f32.mrf.mxu0
      %v1009 = vadd.f32 %v913, %v1008
      %v1010 = vpop.f32.mrf.mxu0
      %1011 = vdwg.mxu0
      %v1012 = vsel %vm531, %v998, 0.0
      %1013 = vadd.xlane.f32.xlu0 %v1012
      %v1014 = vpop.xlane.xlu0 %1013
      %v1015 = vsel %vm531, %v1001, 0.0
      %1016 = vadd.xlane.f32.xlu0 %v1015
      %v1017 = vpop.xlane.xlu0 %1016
      %v1018 = vsel %vm531, %v1006, 0.0
      %1019 = vadd.xlane.f32.xlu0 %v1018
      %v1020 = vpop.xlane.xlu0 %1019
      %v1021 = vsel %vm531, %v1009, 0.0
      %1022 = vadd.xlane.f32.xlu0 %v1021
      %v1023 = vpop.xlane.xlu0 %1022
      %v1024 = vrcp.pop 32.0
      %v1025 = vmul.f32 %v1014, %v1024
      %v1026 = vmul.f32 %v1017, %v1024
      %v1027 = vmul.f32 %v1020, %v1024
      %v1028 = vmul.f32 %v1023, %v1024
      %v1029 = vsub.f32 %v998, %v1025
      %v1030 = vsub.f32 %v1001, %v1026
      %v1031 = vsub.f32 %v1006, %v1027
      %v1032 = vsub.f32 %v1009, %v1028
      %v1033 = vmul.f32 %v1029, %v1029
      %v1034 = vmul.f32 %v1030, %v1030
      %v1035 = vmul.f32 %v1031, %v1031
      %v1036 = vmul.f32 %v1032, %v1032
      %v1037 = vsel %vm531, %v1033, 0.0
      %1038 = vadd.xlane.f32.xlu0 %v1037
      %v1039 = vpop.xlane.xlu0 %1038
      %v1040 = vsel %vm531, %v1034, 0.0
      %1041 = vadd.xlane.f32.xlu0 %v1040
      %v1042 = vpop.xlane.xlu0 %1041
      %v1043 = vsel %vm531, %v1035, 0.0
      %1044 = vadd.xlane.f32.xlu0 %v1043
      %v1045 = vpop.xlane.xlu0 %1044
      %v1046 = vsel %vm531, %v1036, 0.0
      %1047 = vadd.xlane.f32.xlu0 %v1046
      %v1048 = vpop.xlane.xlu0 %1047
      %v1049 = vmul.f32 %v1039, %v1024
      %v1050 = vmul.f32 %v1042, %v1024
      %v1051 = vmul.f32 %v1045, %v1024
      %v1052 = vmul.f32 %v1048, %v1024
      %v1053 = vadd.f32 %v1049, 1e-05
      %v1054 = vadd.f32 %v1050, 1e-05
      %v1055 = vadd.f32 %v1051, 1e-05
      %v1056 = vadd.f32 %v1052, 1e-05
      %v1057 = vrsqrt.pop %v1053
      %v1058 = vrsqrt.pop %v1054
      %v1059 = vrsqrt.pop %v1055
      %v1060 = vrsqrt.pop %v1056
      %v1061 = vmul.f32 %v1029, %v1057
      %v1062 = vmul.f32 %v1030, %v1058
      %v1063 = vmul.f32 %v1031, %v1059
      %v1064 = vmul.f32 %v1032, %v1060
      %v1065 = vld [vmem:[%s11] sm:$0x1]
      %v1067 = vlaneseq
      %v1068 = vshrl.u32 %v1067, 7
      %v1069 = vsub.s32 0, %v1068
      %v1070 = vrot.slane %v1065, %v1069
      %v1072 = vmul.f32 %v1061, %v1070
      %v1073 = vmul.f32 %v1062, %v1070
      %v1074 = vmul.f32 %v1063, %v1070
      %v1075 = vmul.f32 %v1064, %v1070
      %v1076 = vld [vmem:[%s12] sm:$0x1]
      %v1078 = vlaneseq
      %v1079 = vshrl.u32 %v1078, 7
      %v1080 = vsub.s32 0, %v1079
      %v1081 = vrot.slane %v1076, %v1080
      %v1083 = vadd.f32 %v1072, %v1081
      %v1084 = vadd.f32 %v1073, %v1081
      %v1085 = vadd.f32 %v1074, %v1081
      %v1086 = vadd.f32 %v1075, %v1081
      %v1087 = vunpack.c.l.bf16 %v497
      %v1088 = vunpack.c.l.bf16 %v498
      %v1089 = vunpack.c.l.bf16 %v499
      %v1090 = vunpack.c.l.bf16 %v500
      %v1091 = vadd.f32 %v1083, %v1087
      %v1092 = vadd.f32 %v1084, %v1088
      %v1093 = vadd.f32 %v1085, %v1089
      %v1094 = vadd.f32 %v1086, %v1090
      %1095 = vst.msk [vmem:[%s486] sm:$0xff] %vm531, %v1091
      %1096 = vst.msk [vmem:[%s486 + $0x8] sm:$0xff] %vm531, %v1092
      %1097 = vst.msk [vmem:[%s486 + $0x10] sm:$0xff] %vm531, %v1093
      %1098 = vst.msk [vmem:[%s486 + $0x18] sm:$0xff] %vm531, %v1094
      %s1099 = smul.u32 4, %s24
      %p1100 = scmp.lt.s32.totalorder %s1099, 7
      %s1101 = scalar_select %p1100, %s1099, 7
      %s1102 = smul.addr %s1101, 8
      %s1103 = scalar_lea.vmem %s13, %s1102
      // Predicated region
      $region73: #{tpu_custom_call.1} parent=71 // pred_check
        %p1104 = pneg %p330
      $region74: #{tpu_custom_call.1} parent=71 // pred_check_branch
        %1106 = sbr.rel (%p1104) target = $region76
      $region75: #{tpu_custom_call.1} parent=71 // pred_region
        %s1107 = smul.u32 4, %s24
      $region76: #{tpu_custom_call.1} parent=71 // pred_fallthru
        _
    $region72: #{tpu_custom_call.1} parent=5 // pred_fallthru
      _
    %p1108 = scmp.le.s32.totalorder 2, %s19
    // Predicated region
    $region77: #{tpu_custom_call.1} parent=5 // pred_check
      %p1109 = pneg %p1108
    $region78: #{tpu_custom_call.1} parent=5 // pred_check_branch
      %1111 = sbr.rel (%p1109) target = $region80
    $region79: #{tpu_custom_call.1} parent=5 // pred_region
      %s1112 = ssub.s32 %s19, 2
      // Predicated region
      $region81: #{tpu_custom_call.1} parent=79 // pred_check
        %p1113 = pneg %p336
      $region82: #{tpu_custom_call.1} parent=79 // pred_check_branch
        %1115 = sbr.rel (%p1113) target = $region84
      $region83: #{tpu_custom_call.1} parent=79 // pred_region
        %s1116 = smul.u32 4, %s25
        %p1117 = scmp.lt.s32.totalorder %s1116, 7
        %s1118 = scalar_select %p1117, %s1116, 7
        %s1119 = smul.addr %s1118, 8
        %s1120 = scalar_lea.vmem %s13, %s1119
      $region84: #{tpu_custom_call.1} parent=79 // pred_fallthru
        _
    $region80: #{tpu_custom_call.1} parent=5 // pred_fallthru
      _
  $region6: #{tpu_custom_call.1} parent=0 // loop_footer
    %s23 = sadd.s32 1, %s19
  $region7: #{tpu_custom_call.1} parent=0 // loop_footer_branch
    %18 = sbr.rel target = $region3
  $region8: #{tpu_custom_call.1} parent=0 // loop_exit
    _

</llo_original>
